<compile_context>
chip_gen: v6e
topology: v6e:2x2x1
jax: 0.10.0
libtpu: 0.0.40
codegen_flags: <defaults>
</compile_context>

<pallas_src>
import jax
import jax.numpy as jnp
import numpy as np
from jax.experimental import pallas as pl
from jax.experimental.pallas import tpu as pltpu


def _dnn_kernel(x_ref, *refs):
    """(Linear -> ReLU) x N on one batch tile.  Dropout = identity (eval mode).

    refs = (w0, b0, w1, b1, ..., o_ref).  w_i: (in_i, out_i) in the matmul
    dtype (bf16), b_i: (1, out_i) f32.  o_ref may be a lane-dense
    (TB//r, d_out*r) view of the (TB, d_out) result (row-major bit-identical).
    """
    o_ref = refs[-1]
    wb_refs = refs[:-1]
    n_layers = len(wb_refs) // 2

    h = x_ref[...]  # (TB, d_in); x.float() semantics handled in the wrapper
    for i in range(n_layers):
        w = wb_refs[2 * i][...]
        b = wb_refs[2 * i + 1][...]
        # MXU: narrow (bf16) inputs, f32 accumulation.  Bias/ReLU stay f32 on
        # the VPU (correct/safe on v5e which has no bf16 VALU path).
        h = jnp.dot(h.astype(w.dtype), w, preferred_element_type=jnp.float32) + b
        h = jnp.maximum(h, 0.0)  # F.relu
    # TODO(synk): training-mode nn.Dropout (pltpu.prng_seed + prng_random_bits
    # mask with 1/(1-p) scaling) not implemented; eval-mode dropout is identity.
    o_ref[...] = h.reshape(o_ref.shape).astype(o_ref.dtype)


def prepare_params(weights, biases, matmul_dtype=jnp.bfloat16):
    """Pre-transpose nn.Linear weights (out,in)->(in,out) ONCE, off the hot path."""
    wts = [jnp.asarray(w, jnp.float32).T.astype(matmul_dtype) for w in weights]
    bss = [jnp.asarray(b, jnp.float32).reshape(1, -1) for b in biases]
    return wts, bss


def _pick_tb(B, tb, gran):
    """Choose the batch tile: large (amortize ~0.35us/step), aligned to `gran`
    (8 sublanes * lane-dense row-fold), and >=2 grid steps so both v7x TCs work."""
    if tb is None:
        tb = 4096
    tb = min(tb, pl.cdiv(B, gran) * gran)           # never larger than the (rounded) batch
    if pl.cdiv(B, tb) < 2 and B > 2 * gran:         # keep >=2 tiles for v7x megacore
        tb = pl.cdiv(B, 2 * gran) * gran
    tb = max(gran, (tb // gran) * gran)
    return tb


def _dnn_pallas_call(x, flat_params, wts, *, tb, d_out, r, out_dtype):
    """Build and run the pallas_call.  r>1 => lane-dense (B//r, d_out*r) output."""
    B, d_in = x.shape
    n_tiles = pl.cdiv(B, tb)

    in_specs = [pl.BlockSpec((tb, d_in), lambda i: (i, 0))]
    for p in flat_params:
        # Whole (tiny, ~56 KiB) weight/bias stack is VMEM-resident every step.
        # (pipeline_mode=pl.Buffered(1) would drop the redundant double buffer;
        #  left at the default here since the VMEM cost is negligible.)
        in_specs.append(pl.BlockSpec(p.shape, lambda i: (0, 0)))

    out_rows, out_cols = B // r, d_out * r
    out_spec = pl.BlockSpec((tb // r, out_cols), lambda i: (i, 0))

    flops = sum(2 * B * w.shape[0] * w.shape[1] for w in wts)
    bytes_accessed = (int(x.size) * x.dtype.itemsize
                      + B * d_out * np.dtype(out_dtype).itemsize
                      + sum(int(p.size) * p.dtype.itemsize for p in flat_params))

    out = pl.pallas_call(
        _dnn_kernel,
        out_shape=jax.ShapeDtypeStruct((out_rows, out_cols), out_dtype),
        grid=(n_tiles,),
        in_specs=in_specs,
        out_specs=out_spec,
        compiler_params=pltpu.CompilerParams(
            dimension_semantics=("parallel",)),
        cost_estimate=pl.CostEstimate(
            flops=flops, transcendentals=0, bytes_accessed=bytes_accessed),
    )(x, *flat_params)

    return out.reshape(B, d_out)


def dnn_forward(x, wts, bss, *, tb=None, out_dtype=jnp.float32, lane_dense=True):
    """x: (B, d_in); wts[i]: (in_i, out_i); bss[i]: (1, out_i).  Returns (B, d_out)."""
    assert len(wts) == len(bss)
    B, d_in = x.shape
    d_out = wts[-1].shape[1]
    matmul_dtype = wts[0].dtype

    # x.float() semantics: cast non-float inputs to f32.  If x is already the
    # matmul dtype, pass it straight through; the per-layer narrowing to the
    # MXU dtype happens inside the kernel (no extra wrapper HBM pass over x).
    x = jnp.asarray(x)
    if x.dtype != matmul_dtype and x.dtype != jnp.float32:
        x = x.astype(jnp.float32)

    flat_params = []
    for w, b in zip(wts, bss):
        flat_params += [w, b]

    # Lane-dense output: fold r = 128/d_out consecutive rows into one 128-wide
    # row (HBM row-major layout is bit-identical; wrapper reshape is free).
    r = 1
    if lane_dense and 0 < d_out < 128 and 128 % d_out == 0:
        r_cand = 128 // d_out
        if B % r_cand == 0:
            r = r_cand

    if r > 1:
        tb_eff = _pick_tb(B, tb, 8 * r)
        try:
            return _dnn_pallas_call(x, flat_params, wts, tb=tb_eff,
                                    d_out=d_out, r=r, out_dtype=out_dtype)
        except Exception:
            # TODO(synk): this Mosaic build could not lower the in-kernel
            # (TB, d_out) -> (TB//r, 128) reshape; fall back to plain layout.
            pass

    tb_eff = _pick_tb(B, tb, 8)
    return _dnn_pallas_call(x, flat_params, wts, tb=tb_eff,
                            d_out=d_out, r=1, out_dtype=out_dtype)


def dnn_reference(x, wts, bss):
    """Pure-JAX reference replicating the kernel's dtype handling."""
    h = jnp.asarray(x, jnp.float32)
    for w, b in zip(wts, bss):
        h = jnp.dot(h.astype(w.dtype).astype(jnp.float32),
                    w.astype(jnp.float32),
                    preferred_element_type=jnp.float32) + b
        h = jnp.maximum(h, 0.0)
    return h


if __name__ == "__main__":
    # hidden_units like DCN's deep tower: [32, 64, 128, 32]
    hidden_units = [32, 64, 128, 32]
    drop_out = 0.1   # eval-mode dropout => identity

    key = jax.random.PRNGKey(0)
    keys = jax.random.split(key, 1 + 2 * (len(hidden_units) - 1))

    # batch=52: NOT a multiple of the tile (exercises ragged last block, no pad
    # pass) but a multiple of 128/d_out=4 (exercises the lane-dense store).
    batch = 52
    x = jax.random.normal(keys[0], (batch, hidden_units[0]), dtype=jnp.float32)

    weights, biases = [], []
    for i, (din, dout) in enumerate(zip(hidden_units[:-1], hidden_units[1:])):
        # Deterministic init mimicking nn.Linear's uniform(-1/sqrt(in), 1/sqrt(in))
        bound = 1.0 / (din ** 0.5)
        wk, bk = keys[1 + 2 * i], keys[2 + 2 * i]
        weights.append(
            jax.random.uniform(wk, (dout, din), jnp.float32, -bound, bound))
        biases.append(
            jax.random.uniform(bk, (dout,), jnp.float32, -bound, bound))

    # Params transposed/cast once, outside the forward hot path.
    wts, bss = prepare_params(weights, biases, matmul_dtype=jnp.bfloat16)
    ref = dnn_reference(x, wts, bss)

    # 1) small explicit tile: ragged last block + lane-dense (TB//4, 128) store.
    out = jax.block_until_ready(dnn_forward(x, wts, bss, tb=32))
    assert out.shape == (batch, hidden_units[-1]) and out.dtype == jnp.float32
    assert jnp.allclose(out, ref, atol=2e-3, rtol=2e-3), "mismatch (lane-dense path)"

    # 2) auto tile, batch not a multiple of 4: plain (TB, d_out) store path.
    x2 = x[:50]
    out2 = jax.block_until_ready(dnn_forward(x2, wts, bss))
    assert out2.shape == (50, hidden_units[-1])
    assert jnp.allclose(out2, dnn_reference(x2, wts, bss), atol=2e-3, rtol=2e-3), \
        "mismatch (plain path)"

    # 3) optional bf16 output (halves output HBM traffic when downstream allows).
    out3 = jax.block_until_ready(
        dnn_forward(x, wts, bss, tb=32, out_dtype=jnp.bfloat16))
    assert out3.dtype == jnp.bfloat16
    assert jnp.allclose(out3.astype(jnp.float32), ref, atol=2e-2, rtol=2e-2), \
        "mismatch (bf16 output)"

    print("KERNEL_OK")
</pallas_src>

<mosaic_0001>
module attributes {stable_mosaic.version = 11 : i64} {
  func.func @_dnn_kernel(%arg0: i32, %arg1: memref<32x32xf32, #tpu.memory_space<vmem>>, %arg2: memref<32x64xbf16, #tpu.memory_space<vmem>>, %arg3: memref<1x64xf32, #tpu.memory_space<vmem>>, %arg4: memref<64x128xbf16, #tpu.memory_space<vmem>>, %arg5: memref<1x128xf32, #tpu.memory_space<vmem>>, %arg6: memref<128x32xbf16, #tpu.memory_space<vmem>>, %arg7: memref<1x32xf32, #tpu.memory_space<vmem>>, %arg8: memref<8x128xf32, #tpu.memory_space<vmem>>) attributes {dimension_semantics = [#tpu.dimension_semantics<parallel>], iteration_bounds = array<i64: 2>, scalar_prefetch = 0 : i64, scratch_operands = 0 : i64, tpu.core_type = #tpu.core_type<tc>, window_params = [{transform_indices = @transform_0, window_bounds = array<i64: 32, 32>}, {pipeline_mode = #tpu.pipeline_mode<synchronous>, transform_indices = @transform_1, window_bounds = array<i64: 32, 64>}, {pipeline_mode = #tpu.pipeline_mode<synchronous>, transform_indices = @transform_2, window_bounds = array<i64: 1, 64>}, {pipeline_mode = #tpu.pipeline_mode<synchronous>, transform_indices = @transform_3, window_bounds = array<i64: 64, 128>}, {pipeline_mode = #tpu.pipeline_mode<synchronous>, transform_indices = @transform_4, window_bounds = array<i64: 1, 128>}, {pipeline_mode = #tpu.pipeline_mode<synchronous>, transform_indices = @transform_5, window_bounds = array<i64: 128, 32>}, {pipeline_mode = #tpu.pipeline_mode<synchronous>, transform_indices = @transform_6, window_bounds = array<i64: 1, 32>}, {transform_indices = @transform_7, window_bounds = array<i64: 8, 128>}]} {
    %c0 = arith.constant 0 : index
    %c0_0 = arith.constant 0 : index
    %0 = vector.load %arg1[%c0, %c0_0] : memref<32x32xf32, #tpu.memory_space<vmem>>, vector<32x32xf32>
    %c0_1 = arith.constant 0 : index
    %c0_2 = arith.constant 0 : index
    %1 = vector.load %arg2[%c0_1, %c0_2] : memref<32x64xbf16, #tpu.memory_space<vmem>>, vector<32x64xbf16>
    %c0_3 = arith.constant 0 : index
    %c0_4 = arith.constant 0 : index
    %2 = vector.load %arg3[%c0_3, %c0_4] : memref<1x64xf32, #tpu.memory_space<vmem>>, vector<1x64xf32>
    %3 = arith.truncf %0 : vector<32x32xf32> to vector<32x32xbf16>
    %cst = arith.constant dense<0.000000e+00> : vector<32x64xf32>
    %4 = tpu.matmul %3, %1, %cst {dimension_numbers = #tpu.dot_dimension_numbers<[1], [0], [0], [1], [0, 0, 1, 1], [], []>} : vector<32x32xbf16>, vector<32x64xbf16>, vector<32x64xf32> -> vector<32x64xf32>
    %5 = vector.broadcast %2 : vector<1x64xf32> to vector<32x64xf32>
    %6 = arith.addf %4, %5 : vector<32x64xf32>
    %cst_5 = arith.constant 0.000000e+00 : f32
    %7 = vector.broadcast %cst_5 : f32 to vector<32x64xf32>
    %8 = arith.maximumf %6, %7 : vector<32x64xf32>
    %c0_6 = arith.constant 0 : index
    %c0_7 = arith.constant 0 : index
    %9 = vector.load %arg4[%c0_6, %c0_7] : memref<64x128xbf16, #tpu.memory_space<vmem>>, vector<64x128xbf16>
    %c0_8 = arith.constant 0 : index
    %c0_9 = arith.constant 0 : index
    %10 = vector.load %arg5[%c0_8, %c0_9] : memref<1x128xf32, #tpu.memory_space<vmem>>, vector<1x128xf32>
    %11 = arith.truncf %8 : vector<32x64xf32> to vector<32x64xbf16>
    %cst_10 = arith.constant dense<0.000000e+00> : vector<32x128xf32>
    %12 = tpu.matmul %11, %9, %cst_10 {dimension_numbers = #tpu.dot_dimension_numbers<[1], [0], [0], [1], [0, 0, 1, 1], [], []>} : vector<32x64xbf16>, vector<64x128xbf16>, vector<32x128xf32> -> vector<32x128xf32>
    %13 = vector.broadcast %10 : vector<1x128xf32> to vector<32x128xf32>
    %14 = arith.addf %12, %13 : vector<32x128xf32>
    %cst_11 = arith.constant 0.000000e+00 : f32
    %15 = vector.broadcast %cst_11 : f32 to vector<32x128xf32>
    %16 = arith.maximumf %14, %15 : vector<32x128xf32>
    %c0_12 = arith.constant 0 : index
    %c0_13 = arith.constant 0 : index
    %17 = vector.load %arg6[%c0_12, %c0_13] : memref<128x32xbf16, #tpu.memory_space<vmem>>, vector<128x32xbf16>
    %c0_14 = arith.constant 0 : index
    %c0_15 = arith.constant 0 : index
    %18 = vector.load %arg7[%c0_14, %c0_15] : memref<1x32xf32, #tpu.memory_space<vmem>>, vector<1x32xf32>
    %19 = arith.truncf %16 : vector<32x128xf32> to vector<32x128xbf16>
    %cst_16 = arith.constant dense<0.000000e+00> : vector<32x32xf32>
    %20 = tpu.matmul %19, %17, %cst_16 {dimension_numbers = #tpu.dot_dimension_numbers<[1], [0], [0], [1], [0, 0, 1, 1], [], []>} : vector<32x128xbf16>, vector<128x32xbf16>, vector<32x32xf32> -> vector<32x32xf32>
    %21 = vector.broadcast %18 : vector<1x32xf32> to vector<32x32xf32>
    %22 = arith.addf %20, %21 : vector<32x32xf32>
    %cst_17 = arith.constant 0.000000e+00 : f32
    %23 = vector.broadcast %cst_17 : f32 to vector<32x32xf32>
    %24 = arith.maximumf %22, %23 : vector<32x32xf32>
    %25 = vector.shape_cast %24 : vector<32x32xf32> to vector<8x128xf32>
    %c0_18 = arith.constant 0 : index
    %c0_19 = arith.constant 0 : index
    %26 = vector.load %arg8[%c0_18, %c0_19] : memref<8x128xf32, #tpu.memory_space<vmem>>, vector<8x128xf32>
    tpu.vector_store %arg8[%c0_18, %c0_19], %25 {strides = array<i32>} : memref<8x128xf32, #tpu.memory_space<vmem>>, vector<8x128xf32>,
    return
  }
  func.func @transform_0(%arg0: i32) -> (i32, i32) {
    %c0_i32 = arith.constant 0 : i32
    %c0_i32_0 = arith.constant 0 : i32
    return %arg0, %c0_i32 : i32, i32
  }
  func.func @transform_1(%arg0: i32) -> (i32, i32) {
    %c0_i32 = arith.constant 0 : i32
    %c0_i32_0 = arith.constant 0 : i32
    %c0_i32_1 = arith.constant 0 : i32
    return %c0_i32, %c0_i32_0 : i32, i32
  }
  func.func @transform_2(%arg0: i32) -> (i32, i32) {
    %c0_i32 = arith.constant 0 : i32
    %c0_i32_0 = arith.constant 0 : i32
    %c0_i32_1 = arith.constant 0 : i32
    return %c0_i32, %c0_i32_0 : i32, i32
  }
  func.func @transform_3(%arg0: i32) -> (i32, i32) {
    %c0_i32 = arith.constant 0 : i32
    %c0_i32_0 = arith.constant 0 : i32
    %c0_i32_1 = arith.constant 0 : i32
    return %c0_i32, %c0_i32_0 : i32, i32
  }
  func.func @transform_4(%arg0: i32) -> (i32, i32) {
    %c0_i32 = arith.constant 0 : i32
    %c0_i32_0 = arith.constant 0 : i32
    %c0_i32_1 = arith.constant 0 : i32
    return %c0_i32, %c0_i32_0 : i32, i32
  }
  func.func @transform_5(%arg0: i32) -> (i32, i32) {
    %c0_i32 = arith.constant 0 : i32
    %c0_i32_0 = arith.constant 0 : i32
    %c0_i32_1 = arith.constant 0 : i32
    return %c0_i32, %c0_i32_0 : i32, i32
  }
  func.func @transform_6(%arg0: i32) -> (i32, i32) {
    %c0_i32 = arith.constant 0 : i32
    %c0_i32_0 = arith.constant 0 : i32
    %c0_i32_1 = arith.constant 0 : i32
    return %c0_i32, %c0_i32_0 : i32, i32
  }
  func.func @transform_7(%arg0: i32) -> (i32, i32) {
    %c0_i32 = arith.constant 0 : i32
    %c0_i32_0 = arith.constant 0 : i32
    return %arg0, %c0_i32 : i32, i32
  }
}

module attributes {stable_mosaic.version = 11 : i64} {
  func.func @_dnn_kernel(%arg0: i32, %arg1: memref<32x32xf32, #tpu.memory_space<vmem>>, %arg2: memref<32x64xbf16, #tpu.memory_space<vmem>>, %arg3: memref<1x64xf32, #tpu.memory_space<vmem>>, %arg4: memref<64x128xbf16, #tpu.memory_space<vmem>>, %arg5: memref<1x128xf32, #tpu.memory_space<vmem>>, %arg6: memref<128x32xbf16, #tpu.memory_space<vmem>>, %arg7: memref<1x32xf32, #tpu.memory_space<vmem>>, %arg8: memref<32x32xf32, #tpu.memory_space<vmem>>) attributes {dimension_semantics = [#tpu.dimension_semantics<parallel>], iteration_bounds = array<i64: 2>, scalar_prefetch = 0 : i64, scratch_operands = 0 : i64, tpu.core_type = #tpu.core_type<tc>, window_params = [{transform_indices = @transform_0, window_bounds = array<i64: 32, 32>}, {pipeline_mode = #tpu.pipeline_mode<synchronous>, transform_indices = @transform_1, window_bounds = array<i64: 32, 64>}, {pipeline_mode = #tpu.pipeline_mode<synchronous>, transform_indices = @transform_2, window_bounds = array<i64: 1, 64>}, {pipeline_mode = #tpu.pipeline_mode<synchronous>, transform_indices = @transform_3, window_bounds = array<i64: 64, 128>}, {pipeline_mode = #tpu.pipeline_mode<synchronous>, transform_indices = @transform_4, window_bounds = array<i64: 1, 128>}, {pipeline_mode = #tpu.pipeline_mode<synchronous>, transform_indices = @transform_5, window_bounds = array<i64: 128, 32>}, {pipeline_mode = #tpu.pipeline_mode<synchronous>, transform_indices = @transform_6, window_bounds = array<i64: 1, 32>}, {transform_indices = @transform_7, window_bounds = array<i64: 32, 32>}]} {
    %c0 = arith.constant 0 : index
    %c0_0 = arith.constant 0 : index
    %0 = vector.load %arg1[%c0, %c0_0] : memref<32x32xf32, #tpu.memory_space<vmem>>, vector<32x32xf32>
    %c0_1 = arith.constant 0 : index
    %c0_2 = arith.constant 0 : index
    %1 = vector.load %arg2[%c0_1, %c0_2] : memref<32x64xbf16, #tpu.memory_space<vmem>>, vector<32x64xbf16>
    %c0_3 = arith.constant 0 : index
    %c0_4 = arith.constant 0 : index
    %2 = vector.load %arg3[%c0_3, %c0_4] : memref<1x64xf32, #tpu.memory_space<vmem>>, vector<1x64xf32>
    %3 = arith.truncf %0 : vector<32x32xf32> to vector<32x32xbf16>
    %cst = arith.constant dense<0.000000e+00> : vector<32x64xf32>
    %4 = tpu.matmul %3, %1, %cst {dimension_numbers = #tpu.dot_dimension_numbers<[1], [0], [0], [1], [0, 0, 1, 1], [], []>} : vector<32x32xbf16>, vector<32x64xbf16>, vector<32x64xf32> -> vector<32x64xf32>
    %5 = vector.broadcast %2 : vector<1x64xf32> to vector<32x64xf32>
    %6 = arith.addf %4, %5 : vector<32x64xf32>
    %cst_5 = arith.constant 0.000000e+00 : f32
    %7 = vector.broadcast %cst_5 : f32 to vector<32x64xf32>
    %8 = arith.maximumf %6, %7 : vector<32x64xf32>
    %c0_6 = arith.constant 0 : index
    %c0_7 = arith.constant 0 : index
    %9 = vector.load %arg4[%c0_6, %c0_7] : memref<64x128xbf16, #tpu.memory_space<vmem>>, vector<64x128xbf16>
    %c0_8 = arith.constant 0 : index
    %c0_9 = arith.constant 0 : index
    %10 = vector.load %arg5[%c0_8, %c0_9] : memref<1x128xf32, #tpu.memory_space<vmem>>, vector<1x128xf32>
    %11 = arith.truncf %8 : vector<32x64xf32> to vector<32x64xbf16>
    %cst_10 = arith.constant dense<0.000000e+00> : vector<32x128xf32>
    %12 = tpu.matmul %11, %9, %cst_10 {dimension_numbers = #tpu.dot_dimension_numbers<[1], [0], [0], [1], [0, 0, 1, 1], [], []>} : vector<32x64xbf16>, vector<64x128xbf16>, vector<32x128xf32> -> vector<32x128xf32>
    %13 = vector.broadcast %10 : vector<1x128xf32> to vector<32x128xf32>
    %14 = arith.addf %12, %13 : vector<32x128xf32>
    %cst_11 = arith.constant 0.000000e+00 : f32
    %15 = vector.broadcast %cst_11 : f32 to vector<32x128xf32>
    %16 = arith.maximumf %14, %15 : vector<32x128xf32>
    %c0_12 = arith.constant 0 : index
    %c0_13 = arith.constant 0 : index
    %17 = vector.load %arg6[%c0_12, %c0_13] : memref<128x32xbf16, #tpu.memory_space<vmem>>, vector<128x32xbf16>
    %c0_14 = arith.constant 0 : index
    %c0_15 = arith.constant 0 : index
    %18 = vector.load %arg7[%c0_14, %c0_15] : memref<1x32xf32, #tpu.memory_space<vmem>>, vector<1x32xf32>
    %19 = arith.truncf %16 : vector<32x128xf32> to vector<32x128xbf16>
    %cst_16 = arith.constant dense<0.000000e+00> : vector<32x32xf32>
    %20 = tpu.matmul %19, %17, %cst_16 {dimension_numbers = #tpu.dot_dimension_numbers<[1], [0], [0], [1], [0, 0, 1, 1], [], []>} : vector<32x128xbf16>, vector<128x32xbf16>, vector<32x32xf32> -> vector<32x32xf32>
    %21 = vector.broadcast %18 : vector<1x32xf32> to vector<32x32xf32>
    %22 = arith.addf %20, %21 : vector<32x32xf32>
    %cst_17 = arith.constant 0.000000e+00 : f32
    %23 = vector.broadcast %cst_17 : f32 to vector<32x32xf32>
    %24 = arith.maximumf %22, %23 : vector<32x32xf32>
    %c0_18 = arith.constant 0 : index
    %c0_19 = arith.constant 0 : index
    %25 = vector.load %arg8[%c0_18, %c0_19] : memref<32x32xf32, #tpu.memory_space<vmem>>, vector<32x32xf32>
    tpu.vector_store %arg8[%c0_18, %c0_19], %24 {strides = array<i32>} : memref<32x32xf32, #tpu.memory_space<vmem>>, vector<32x32xf32>,
    return
  }
  func.func @transform_0(%arg0: i32) -> (i32, i32) {
    %c0_i32 = arith.constant 0 : i32
    %c0_i32_0 = arith.constant 0 : i32
    return %arg0, %c0_i32 : i32, i32
  }
  func.func @transform_1(%arg0: i32) -> (i32, i32) {
    %c0_i32 = arith.constant 0 : i32
    %c0_i32_0 = arith.constant 0 : i32
    %c0_i32_1 = arith.constant 0 : i32
    return %c0_i32, %c0_i32_0 : i32, i32
  }
  func.func @transform_2(%arg0: i32) -> (i32, i32) {
    %c0_i32 = arith.constant 0 : i32
    %c0_i32_0 = arith.constant 0 : i32
    %c0_i32_1 = arith.constant 0 : i32
    return %c0_i32, %c0_i32_0 : i32, i32
  }
  func.func @transform_3(%arg0: i32) -> (i32, i32) {
    %c0_i32 = arith.constant 0 : i32
    %c0_i32_0 = arith.constant 0 : i32
    %c0_i32_1 = arith.constant 0 : i32
    return %c0_i32, %c0_i32_0 : i32, i32
  }
  func.func @transform_4(%arg0: i32) -> (i32, i32) {
    %c0_i32 = arith.constant 0 : i32
    %c0_i32_0 = arith.constant 0 : i32
    %c0_i32_1 = arith.constant 0 : i32
    return %c0_i32, %c0_i32_0 : i32, i32
  }
  func.func @transform_5(%arg0: i32) -> (i32, i32) {
    %c0_i32 = arith.constant 0 : i32
    %c0_i32_0 = arith.constant 0 : i32
    %c0_i32_1 = arith.constant 0 : i32
    return %c0_i32, %c0_i32_0 : i32, i32
  }
  func.func @transform_6(%arg0: i32) -> (i32, i32) {
    %c0_i32 = arith.constant 0 : i32
    %c0_i32_0 = arith.constant 0 : i32
    %c0_i32_1 = arith.constant 0 : i32
    return %c0_i32, %c0_i32_0 : i32, i32
  }
  func.func @transform_7(%arg0: i32) -> (i32, i32) {
    %c0_i32 = arith.constant 0 : i32
    %c0_i32_0 = arith.constant 0 : i32
    return %arg0, %c0_i32 : i32, i32
  }
}

</mosaic_0001>

<llo_original>
// kernel: tpu_custom_call.1
$region0: #{tpu_custom_call.1}
  #allocation0 [shape = 'u32[]', space=smem, size = 0x4, offset = 0x4, fixed_abs, tag = 'smem constant byte address 0x4 - core index']
  #allocation1 [shape = 'u32[144,128]{1,0:T(1,128)}', space=vmem, size = 0x12000, scoped, tag = 'internal scratch']
  %s0 = inlined_call_operand.vmem [shape: f32[52,32], index: 0, kind: input, shape index: {}]
  %s1 = inlined_call_operand.vmem [shape: bf16[32,64], index: 1, kind: input, shape index: {}]
  %s2 = inlined_call_operand.vmem [shape: f32[1,64], index: 2, kind: input, shape index: {}]
  %s3 = inlined_call_operand.vmem [shape: bf16[64,128], index: 3, kind: input, shape index: {}]
  %s4 = inlined_call_operand.vmem [shape: f32[1,128], index: 4, kind: input, shape index: {}]
  %s5 = inlined_call_operand.vmem [shape: bf16[128,32], index: 5, kind: input, shape index: {}]
  %s6 = inlined_call_operand.vmem [shape: f32[1,32], index: 6, kind: input, shape index: {}]
  %s7 = inlined_call_operand.vmem [shape: f32[52,32], index: 7, kind: output, shape index: {}]
  %s8 = sld [smem:[#allocation0]]
  $region109: #{tpu_custom_call.1} parent=0
    _
  %s10 = ssub.s32 1, %s8
  %s11 = scalar_select 0, %s10, %s8
  $region1: #{tpu_custom_call.1} parent=0
    #allocation2 [shape = 'u8[32768]{0}', space=vmem, size = 0x8000, scoped, tag = 'output window, operand 0']
    loop: start=0, step=1, limit=4
    $region2: #{tpu_custom_call.1} parent=1 // loop_pre_header
      _
    $region3: #{tpu_custom_call.1} parent=1 // loop_header
      %s13 = sphi 0, %s17
      %p14 = scmp.ge.s32.totalorder %s13, 4
      %s23 = sphi 0, %s25
      %s26 = sphi 0, %s23
      %s27 = sphi 0, %s26
      %s43 = sphi 0, %s27
      %s47 = sphi 0, %s47
      %s49 = sphi 0, %s47
      %s50 = sphi 0, %s49
      %s64 = sphi 0, %s50
      %s68 = sphi 0, %s68
      %s70 = sphi 0, %s68
      %s71 = sphi 0, %s70
      %s85 = sphi 0, %s71
      %s89 = sphi 0, %s89
      %s91 = sphi 0, %s89
      %s92 = sphi 0, %s91
      %s106 = sphi 0, %s92
      %s110 = sphi 0, %s110
      %s112 = sphi 0, %s110
      %s113 = sphi 0, %s112
      %s127 = sphi 0, %s113
      %s131 = sphi 0, %s131
      %s133 = sphi 0, %s131
      %s134 = sphi 0, %s133
      %s148 = sphi 0, %s134
      %s152 = sphi 0, %s152
      %s154 = sphi 0, %s152
      %s155 = sphi 0, %s154
      %s169 = sphi 0, %s155
      %s175 = sphi 0, %s177
      %s178 = sphi 0, %s175
      %s179 = sphi 0, %s178
      %s195 = sphi 0, %s179
    $region4: #{tpu_custom_call.1} parent=1 // loop_header_branch
      %16 = sbr.rel (%p14) target = $region8
    $region5: #{tpu_custom_call.1} parent=1 // loop_body
      %s18 = ssub.s32 %s13, 1
      %s19 = ssub.s32 %s13, 2
      %s20 = sadd.s32 %s13, 1
      %s21 = ssub.s32 %s13, %s20
      %p22 = scmp.eq.s32.totalorder %s21, 0
      %s24 = sadd.s32 %s23, 1
      %s25 = scalar_select %p22, %s23, %s24
      %p28 = pneg %p22
      %p29 = scmp.eq.s32.totalorder %s13, 1
      %p30 = por %p28, %p29
      %p31 = scmp.ne.s32.totalorder %s23, %s26
      %p32 = scmp.eq.s32.totalorder %s13, 0
      %p33 = por %p31, %p32
      %p34 = scmp.ne.s32.totalorder %s23, %s26
      %p35 = scmp.eq.s32.totalorder %s18, 1
      %p36 = por %p34, %p35
      %p37 = scmp.ne.s32.totalorder %s26, %s27
      %p38 = scmp.eq.s32.totalorder %s18, 0
      %p39 = por %p37, %p38
      %p40 = scmp.ne.s32.totalorder %s26, %s27
      %p41 = scmp.eq.s32.totalorder %s19, 1
      %p42 = por %p40, %p41
      %p44 = scmp.ne.s32.totalorder %s27, %s43
      %p45 = scmp.eq.s32.totalorder %s19, 0
      %p46 = por %p44, %p45
      %s48 = sadd.s32 %s47, 1
      %p51 = scmp.eq.s32.totalorder %s13, 1
      %p52 = scmp.ne.s32.totalorder %s47, %s49
      %p53 = scmp.eq.s32.totalorder %s13, 0
      %p54 = por %p52, %p53
      %p55 = scmp.ne.s32.totalorder %s47, %s49
      %p56 = scmp.eq.s32.totalorder %s18, 1
      %p57 = por %p55, %p56
      %p58 = scmp.ne.s32.totalorder %s49, %s50
      %p59 = scmp.eq.s32.totalorder %s18, 0
      %p60 = por %p58, %p59
      %p61 = scmp.ne.s32.totalorder %s49, %s50
      %p62 = scmp.eq.s32.totalorder %s19, 1
      %p63 = por %p61, %p62
      %p65 = scmp.ne.s32.totalorder %s50, %s64
      %p66 = scmp.eq.s32.totalorder %s19, 0
      %p67 = por %p65, %p66
      %s69 = sadd.s32 %s68, 1
      %p72 = scmp.eq.s32.totalorder %s13, 1
      %p73 = scmp.ne.s32.totalorder %s68, %s70
      %p74 = scmp.eq.s32.totalorder %s13, 0
      %p75 = por %p73, %p74
      %p76 = scmp.ne.s32.totalorder %s68, %s70
      %p77 = scmp.eq.s32.totalorder %s18, 1
      %p78 = por %p76, %p77
      %p79 = scmp.ne.s32.totalorder %s70, %s71
      %p80 = scmp.eq.s32.totalorder %s18, 0
      %p81 = por %p79, %p80
      %p82 = scmp.ne.s32.totalorder %s70, %s71
      %p83 = scmp.eq.s32.totalorder %s19, 1
      %p84 = por %p82, %p83
      %p86 = scmp.ne.s32.totalorder %s71, %s85
      %p87 = scmp.eq.s32.totalorder %s19, 0
      %p88 = por %p86, %p87
      %s90 = sadd.s32 %s89, 1
      %p93 = scmp.eq.s32.totalorder %s13, 1
      %p94 = scmp.ne.s32.totalorder %s89, %s91
      %p95 = scmp.eq.s32.totalorder %s13, 0
      %p96 = por %p94, %p95
      %p97 = scmp.ne.s32.totalorder %s89, %s91
      %p98 = scmp.eq.s32.totalorder %s18, 1
      %p99 = por %p97, %p98
      %p100 = scmp.ne.s32.totalorder %s91, %s92
      %p101 = scmp.eq.s32.totalorder %s18, 0
      %p102 = por %p100, %p101
      %p103 = scmp.ne.s32.totalorder %s91, %s92
      %p104 = scmp.eq.s32.totalorder %s19, 1
      %p105 = por %p103, %p104
      %p107 = scmp.ne.s32.totalorder %s92, %s106
      %p108 = scmp.eq.s32.totalorder %s19, 0
      %p109 = por %p107, %p108
      %s111 = sadd.s32 %s110, 1
      %p114 = scmp.eq.s32.totalorder %s13, 1
      %p115 = scmp.ne.s32.totalorder %s110, %s112
      %p116 = scmp.eq.s32.totalorder %s13, 0
      %p117 = por %p115, %p116
      %p118 = scmp.ne.s32.totalorder %s110, %s112
      %p119 = scmp.eq.s32.totalorder %s18, 1
      %p120 = por %p118, %p119
      %p121 = scmp.ne.s32.totalorder %s112, %s113
      %p122 = scmp.eq.s32.totalorder %s18, 0
      %p123 = por %p121, %p122
      %p124 = scmp.ne.s32.totalorder %s112, %s113
      %p125 = scmp.eq.s32.totalorder %s19, 1
      %p126 = por %p124, %p125
      %p128 = scmp.ne.s32.totalorder %s113, %s127
      %p129 = scmp.eq.s32.totalorder %s19, 0
      %p130 = por %p128, %p129
      %s132 = sadd.s32 %s131, 1
      %p135 = scmp.eq.s32.totalorder %s13, 1
      %p136 = scmp.ne.s32.totalorder %s131, %s133
      %p137 = scmp.eq.s32.totalorder %s13, 0
      %p138 = por %p136, %p137
      %p139 = scmp.ne.s32.totalorder %s131, %s133
      %p140 = scmp.eq.s32.totalorder %s18, 1
      %p141 = por %p139, %p140
      %p142 = scmp.ne.s32.totalorder %s133, %s134
      %p143 = scmp.eq.s32.totalorder %s18, 0
      %p144 = por %p142, %p143
      %p145 = scmp.ne.s32.totalorder %s133, %s134
      %p146 = scmp.eq.s32.totalorder %s19, 1
      %p147 = por %p145, %p146
      %p149 = scmp.ne.s32.totalorder %s134, %s148
      %p150 = scmp.eq.s32.totalorder %s19, 0
      %p151 = por %p149, %p150
      %s153 = sadd.s32 %s152, 1
      %p156 = scmp.eq.s32.totalorder %s13, 1
      %p157 = scmp.ne.s32.totalorder %s152, %s154
      %p158 = scmp.eq.s32.totalorder %s13, 0
      %p159 = por %p157, %p158
      %p160 = scmp.ne.s32.totalorder %s152, %s154
      %p161 = scmp.eq.s32.totalorder %s18, 1
      %p162 = por %p160, %p161
      %p163 = scmp.ne.s32.totalorder %s154, %s155
      %p164 = scmp.eq.s32.totalorder %s18, 0
      %p165 = por %p163, %p164
      %p166 = scmp.ne.s32.totalorder %s154, %s155
      %p167 = scmp.eq.s32.totalorder %s19, 1
      %p168 = por %p166, %p167
      %p170 = scmp.ne.s32.totalorder %s155, %s169
      %p171 = scmp.eq.s32.totalorder %s19, 0
      %p172 = por %p170, %p171
      %s173 = ssub.s32 %s13, %s20
      %p174 = scmp.eq.s32.totalorder %s173, 0
      %s176 = sadd.s32 %s175, 1
      %s177 = scalar_select %p174, %s175, %s176
      %p180 = pneg %p174
      %p181 = scmp.eq.s32.totalorder %s13, 1
      %p182 = por %p180, %p181
      %p183 = scmp.ne.s32.totalorder %s175, %s178
      %p184 = scmp.eq.s32.totalorder %s13, 0
      %p185 = por %p183, %p184
      %p186 = scmp.ne.s32.totalorder %s175, %s178
      %p187 = scmp.eq.s32.totalorder %s18, 1
      %p188 = por %p186, %p187
      %p189 = scmp.ne.s32.totalorder %s178, %s179
      %p190 = scmp.eq.s32.totalorder %s18, 0
      %p191 = por %p189, %p190
      %p192 = scmp.ne.s32.totalorder %s178, %s179
      %p193 = scmp.eq.s32.totalorder %s19, 1
      %p194 = por %p192, %p193
      %p196 = scmp.ne.s32.totalorder %s179, %s195
      %p197 = scmp.eq.s32.totalorder %s19, 0
      %p198 = por %p196, %p197
      %p199 = scmp.le.s32.totalorder 1, %s13
      %p200 = scmp.lt.s32.totalorder %s13, 3
      %p201 = pnand %p199, %p200
      %p202 = pneg %p201
      // Predicated region
      $region9: #{tpu_custom_call.1} parent=5 // pred_check
        _
      $region10: #{tpu_custom_call.1} parent=5 // pred_check_branch
        %204 = sbr.rel (%p201) target = $region12
      $region11: #{tpu_custom_call.1} parent=5 // pred_region
        %s205 = ssub.s32 %s13, 1
        // Predicated region
        $region13: #{tpu_custom_call.1} parent=11 // pred_check
          %p206 = pneg %p60
        $region14: #{tpu_custom_call.1} parent=11 // pred_check_branch
          %208 = sbr.rel (%p206) target = $region16
        $region15: #{tpu_custom_call.1} parent=11 // pred_region
          _
        $region16: #{tpu_custom_call.1} parent=11 // pred_fallthru
          _
        // Predicated region
        $region17: #{tpu_custom_call.1} parent=11 // pred_check
          %p209 = pneg %p81
        $region18: #{tpu_custom_call.1} parent=11 // pred_check_branch
          %211 = sbr.rel (%p209) target = $region20
        $region19: #{tpu_custom_call.1} parent=11 // pred_region
          _
        $region20: #{tpu_custom_call.1} parent=11 // pred_fallthru
          _
        // Predicated region
        $region21: #{tpu_custom_call.1} parent=11 // pred_check
          %p212 = pneg %p102
        $region22: #{tpu_custom_call.1} parent=11 // pred_check_branch
          %214 = sbr.rel (%p212) target = $region24
        $region23: #{tpu_custom_call.1} parent=11 // pred_region
          _
        $region24: #{tpu_custom_call.1} parent=11 // pred_fallthru
          _
        // Predicated region
        $region25: #{tpu_custom_call.1} parent=11 // pred_check
          %p215 = pneg %p123
        $region26: #{tpu_custom_call.1} parent=11 // pred_check_branch
          %217 = sbr.rel (%p215) target = $region28
        $region27: #{tpu_custom_call.1} parent=11 // pred_region
          _
        $region28: #{tpu_custom_call.1} parent=11 // pred_fallthru
          _
        // Predicated region
        $region29: #{tpu_custom_call.1} parent=11 // pred_check
          %p218 = pneg %p144
        $region30: #{tpu_custom_call.1} parent=11 // pred_check_branch
          %220 = sbr.rel (%p218) target = $region32
        $region31: #{tpu_custom_call.1} parent=11 // pred_region
          _
        $region32: #{tpu_custom_call.1} parent=11 // pred_fallthru
          _
        // Predicated region
        $region33: #{tpu_custom_call.1} parent=11 // pred_check
          %p221 = pneg %p165
        $region34: #{tpu_custom_call.1} parent=11 // pred_check_branch
          %223 = sbr.rel (%p221) target = $region36
        $region35: #{tpu_custom_call.1} parent=11 // pred_region
          _
        $region36: #{tpu_custom_call.1} parent=11 // pred_fallthru
          _
      $region12: #{tpu_custom_call.1} parent=5 // pred_fallthru
        _
      %p224 = scmp.lt.s32.totalorder %s13, 2
      // Predicated region
      $region37: #{tpu_custom_call.1} parent=5 // pred_check
        %p225 = pneg %p224
      $region38: #{tpu_custom_call.1} parent=5 // pred_check_branch
        %227 = sbr.rel (%p225) target = $region40
      $region39: #{tpu_custom_call.1} parent=5 // pred_region
        // Predicated region
        $region41: #{tpu_custom_call.1} parent=39 // pred_check
          %p228 = pneg %p33
        $region42: #{tpu_custom_call.1} parent=39 // pred_check_branch
          %230 = sbr.rel (%p228) target = $region44
        $region43: #{tpu_custom_call.1} parent=39 // pred_region
          %s231 = smul.u32 4, %s13
          %s232 = ssub.s32 7, %s231
          %p233 = scmp.lt.s32.totalorder %s232, 4
          %s234 = scalar_select %p233, %s232, 4
          %s235 = smul.u32 128, %s234
          %p236 = scmp.lt.s32.totalorder %s231, 6
          %s237 = scalar_select %p236, %s231, 6
          %s238 = smul.addr %s237, 8
          %s239 = scalar_lea.vmem %s0, %s238
          %s240 = smul.u32 4, %s13
          %s241 = ssub.s32 7, %s240
          %p242 = scmp.lt.s32.totalorder %s241, 4
          %s243 = scalar_select %p242, %s241, 4
          %s244 = smul.u32 128, %s243
        $region44: #{tpu_custom_call.1} parent=39 // pred_fallthru
          _
      $region40: #{tpu_custom_call.1} parent=5 // pred_fallthru
        _
      %p245 = scmp.le.s32.totalorder 1, %s13
      %p246 = scmp.lt.s32.totalorder %s13, 3
      %p247 = pnand %p245, %p246
      %p248 = pneg %p247
      // Predicated region
      $region45: #{tpu_custom_call.1} parent=5 // pred_check
        _
      $region46: #{tpu_custom_call.1} parent=5 // pred_check_branch
        %250 = sbr.rel (%p247) target = $region48
      $region47: #{tpu_custom_call.1} parent=5 // pred_region
        %s251 = ssub.s32 %s13, 1
        %s252 = smul.u32 4, %s18
        %s253 = ssub.s32 7, %s252
        %p254 = scmp.lt.s32.totalorder %s253, 4
        %s255 = scalar_select %p254, %s253, 4
        %s256 = smul.u32 128, %s255
        %p257 = scmp.lt.s32.totalorder %s252, 6
        %s258 = scalar_select %p257, %s252, 6
        %s259 = smul.addr %s258, 8
        %s260 = scalar_lea.vmem %s0, %s259
        %p261 = pneg %p39
        %p262 = pneg %p36
        %p263 = pneg %p60
        %p264 = pneg %p57
        %p265 = pneg %p81
        %p266 = pneg %p78
        %p267 = pneg %p102
        %p268 = pneg %p99
        %p269 = pneg %p123
        %p270 = pneg %p120
        %p271 = pneg %p144
        %p272 = pneg %p141
        %p273 = pneg %p165
        %p274 = pneg %p162
        %p275 = pneg %p191
        %p276 = pneg %p188
        %s277 = sand.u32 %s178, 1
        %s278 = sand.u32 %s178, 1
        %s279 = smul.addr %s278, 32
        %s280 = scalar_lea.vmem [#allocation2], %s279
        %s281 = smul.u32 4, %s18
        %s282 = ssub.s32 7, %s281
        %p283 = scmp.lt.s32.totalorder %s282, 4
        %s284 = scalar_select %p283, %s282, 4
        %s285 = smul.u32 128, %s284
        %p286 = scmp.lt.s32.totalorder %s281, 6
        %s287 = scalar_select %p286, %s281, 6
        %s288 = smul.addr %s287, 8
        %s289 = scalar_lea.vmem %s0, %s288
        %s290 = smul.u32 4, %s18
        %s291 = ssub.s32 7, %s290
        %p292 = scmp.lt.s32.totalorder %s291, 4
        %s293 = scalar_select %p292, %s291, 4
        %s294 = smul.u32 128, %s293
        %s295 = smul.u32 4, %s18
        %s296 = ssub.s32 7, %s295
        %p297 = scmp.lt.s32.totalorder %s296, 4
        %s298 = scalar_select %p297, %s296, 4
        %s299 = smul.u32 128, %s298
        %v301 = vld [vmem:[%s289] sm:$0xff]
        %v302 = vld [vmem:[%s289 + $0x8] sm:$0xff]
        %v303 = vld [vmem:[%s289 + $0x10] sm:$0xff]
        %v304 = vld [vmem:[%s289 + $0x18] sm:$0xff]
        %v305 = vld [vmem:[%s1] sm:$0xf]
        %v306 = vld [vmem:[%s1 + $0x4] sm:$0xf]
        %v307 = vld [vmem:[%s1 + $0x8] sm:$0xf]
        %v308 = vld [vmem:[%s1 + $0xc] sm:$0xf]
        %v309 = vld [vmem:[%s2] sm:$0x1]
        %v310 = vpack.c.bf16 %v302, %v301
        %v311 = vpack.c.bf16 %v304, %v303
        %v313 = vlaneseq
        %v314 = vshrl.u32 %v313, 7
        %v315 = vsub.s32 0, %v314
        %v316 = vrot.slane %v309, %v315
        %v322 = vunpack.c.l.b16 %v305
        %v323 = vunpack.c.l.b16 %v306
        %v324 = vunpack.c.l.b16 %v307
        %v325 = vunpack.c.l.b16 %v308
        %v326 = vpack.c.b16 %v323, %v322
        %v327 = vpack.c.b16 %v325, %v324
        %vm330 = vcmask 261120
        %v332 = vsel %vm330, %v310, 0
        %v335 = vsel %vm330, %v311, 0
        %337 = vmatprep.subr.bf16.mxu0 0
        %338 = vmatpush1.bf16.msra.mxu0 0
        %339 = vmatprep.subr.bf16.mxu0 0
        %340 = vmatpush1.bf16.msra.mxu0 0
        %341 = vmatprep.subr.bf16.mxu0 0
        %342 = vmatpush1.bf16.msra.mxu0 0
        %343 = vmatprep.subr.bf16.mxu0 0
        %344 = vmatpush1.bf16.msra.mxu0 0
        %345 = vmatprep.subr.bf16.mxu0 0
        %346 = vmatpush1.bf16.msra.mxu0 0
        %347 = vmatprep.subr.bf16.mxu0 0
        %348 = vmatpush1.bf16.msra.mxu0 0
        %349 = vmatprep.subr.bf16.mxu0 0
        %350 = vmatpush1.bf16.msra.mxu0 %v327
        %351 = vmatprep.subr.bf16.mxu0 0
        %352 = vmatpush1.bf16.msra.mxu0 %v326
        %353 = vmatprep.subr.bf16.mxu0 0
        %354 = vmatpush2.bf16.msra.mxu0 0
        %355 = vmatprep.subr.bf16.mxu0 0
        %356 = vmatpush2.bf16.msra.mxu0 0
        %357 = vmatprep.subr.bf16.mxu0 0
        %358 = vmatpush2.bf16.msra.mxu0 0
        %359 = vmatprep.subr.bf16.mxu0 0
        %360 = vmatpush2.bf16.msra.mxu0 0
        %361 = vmatprep.subr.bf16.mxu0 0
        %362 = vmatpush2.bf16.msra.mxu0 0
        %363 = vmatprep.subr.bf16.mxu0 0
        %364 = vmatpush2.bf16.msra.mxu0 0
        %365 = vmatprep.subr.bf16.mxu0 0
        %366 = vmatpush2.bf16.msra.mxu0 0
        %367 = vmatprep.subr.bf16.mxu0 0
        %368 = vmatpush2.bf16.msra.mxu0 0
        %369 = vmatprep.mubr.bf16.mxu0 0
        %370 = vmatmul.mubr.bf16.gmra.mxu0 %v332
        %v371 = vpop.f32.mrf.mxu0
        %v372 = vadd.f32 %v316, %v371
        %v373 = vpop.f32.mrf.mxu0
        %v374 = vpop.f32.mrf.mxu0
        %v375 = vadd.f32 %v316, %v374
        %v376 = vpop.f32.mrf.mxu0
        %377 = vmatprep.mubr.bf16.mxu0 0
        %378 = vmatmul.mubr.bf16.gmra.mxu0 %v335
        %v379 = vpop.f32.mrf.mxu0
        %v380 = vadd.f32 %v316, %v379
        %v381 = vpop.f32.mrf.mxu0
        %v382 = vpop.f32.mrf.mxu0
        %v383 = vadd.f32 %v316, %v382
        %v384 = vpop.f32.mrf.mxu0
        %385 = vdwg.mxu0
        %v386 = vmax.f32 %v372, 0.0
        %v387 = vmax.f32 %v375, 0.0
        %v388 = vmax.f32 %v380, 0.0
        %v389 = vmax.f32 %v383, 0.0
        %v390 = vld [vmem:[%s3] sm:$0xf]
        %v391 = vld [vmem:[%s3 + $0x4] sm:$0xf]
        %v392 = vld [vmem:[%s3 + $0x8] sm:$0xf]
        %v393 = vld [vmem:[%s3 + $0xc] sm:$0xf]
        %v394 = vld [vmem:[%s3 + $0x10] sm:$0xf]
        %v395 = vld [vmem:[%s3 + $0x14] sm:$0xf]
        %v396 = vld [vmem:[%s3 + $0x18] sm:$0xf]
        %v397 = vld [vmem:[%s3 + $0x1c] sm:$0xf]
        %v398 = vld [vmem:[%s4] sm:$0x1]
        %v399 = vpack.c.bf16 %v387, %v386
        %v400 = vpack.c.bf16 %v389, %v388
        %v402 = vlaneseq
        %v403 = vshrl.u32 %v402, 7
        %v404 = vsub.s32 0, %v403
        %v405 = vrot.slane %v398, %v404
        %v415 = vunpack.c.l.b16 %v390
        %v416 = vunpack.c.l.b16 %v391
        %v417 = vunpack.c.l.b16 %v392
        %v418 = vunpack.c.l.b16 %v393
        %v419 = vunpack.c.l.b16 %v394
        %v420 = vunpack.c.l.b16 %v395
        %v421 = vunpack.c.l.b16 %v396
        %v422 = vunpack.c.l.b16 %v397
        %v423 = vpack.c.b16 %v416, %v415
        %v424 = vpack.c.b16 %v418, %v417
        %v425 = vpack.c.b16 %v420, %v419
        %v426 = vpack.c.b16 %v422, %v421
        %vm431 = vcmask 523264
        %v433 = vsel %vm431, %v399, 0
        %v436 = vsel %vm431, %v400, 0
        %438 = vmatprep.subr.bf16.mxu0 0
        %439 = vmatpush1.bf16.msra.mxu0 0
        %440 = vmatprep.subr.bf16.mxu0 0
        %441 = vmatpush1.bf16.msra.mxu0 0
        %442 = vmatprep.subr.bf16.mxu0 0
        %443 = vmatpush1.bf16.msra.mxu0 0
        %444 = vmatprep.subr.bf16.mxu0 0
        %445 = vmatpush1.bf16.msra.mxu0 0
        %446 = vmatprep.subr.bf16.mxu0 0
        %447 = vmatpush1.bf16.msra.mxu0 %v426
        %448 = vmatprep.subr.bf16.mxu0 0
        %449 = vmatpush1.bf16.msra.mxu0 %v425
        %450 = vmatprep.subr.bf16.mxu0 0
        %451 = vmatpush1.bf16.msra.mxu0 %v424
        %452 = vmatprep.subr.bf16.mxu0 0
        %453 = vmatpush1.bf16.msra.mxu0 %v423
        %454 = vmatprep.subr.bf16.mxu0 0
        %455 = vmatpush2.bf16.msra.mxu0 0
        %456 = vmatprep.subr.bf16.mxu0 0
        %457 = vmatpush2.bf16.msra.mxu0 0
        %458 = vmatprep.subr.bf16.mxu0 0
        %459 = vmatpush2.bf16.msra.mxu0 0
        %460 = vmatprep.subr.bf16.mxu0 0
        %461 = vmatpush2.bf16.msra.mxu0 0
        %462 = vmatprep.subr.bf16.mxu0 0
        %463 = vmatpush2.bf16.msra.mxu0 0
        %464 = vmatprep.subr.bf16.mxu0 0
        %465 = vmatpush2.bf16.msra.mxu0 0
        %466 = vmatprep.subr.bf16.mxu0 0
        %467 = vmatpush2.bf16.msra.mxu0 0
        %468 = vmatprep.subr.bf16.mxu0 0
        %469 = vmatpush2.bf16.msra.mxu0 0
        %470 = vmatprep.mubr.bf16.mxu0 0
        %471 = vmatmul.mubr.bf16.gmra.mxu0 %v433
        %v472 = vpop.f32.mrf.mxu0
        %v473 = vadd.f32 %v405, %v472
        %v474 = vpop.f32.mrf.mxu0
        %v475 = vpop.f32.mrf.mxu0
        %v476 = vadd.f32 %v405, %v475
        %v477 = vpop.f32.mrf.mxu0
        %478 = vmatprep.mubr.bf16.mxu0 0
        %479 = vmatmul.mubr.bf16.gmra.mxu0 %v436
        %v480 = vpop.f32.mrf.mxu0
        %v481 = vadd.f32 %v405, %v480
        %v482 = vpop.f32.mrf.mxu0
        %v483 = vpop.f32.mrf.mxu0
        %v484 = vadd.f32 %v405, %v483
        %v485 = vpop.f32.mrf.mxu0
        %486 = vdwg.mxu0
        %v487 = vmax.f32 %v473, 0.0
        %v488 = vmax.f32 %v476, 0.0
        %v489 = vmax.f32 %v481, 0.0
        %v490 = vmax.f32 %v484, 0.0
        %v491 = vld [vmem:[%s5] sm:$0xf]
        %v492 = vld [vmem:[%s5 + $0x4] sm:$0xf]
        %v493 = vld [vmem:[%s5 + $0x8] sm:$0xf]
        %v494 = vld [vmem:[%s5 + $0xc] sm:$0xf]
        %v495 = vld [vmem:[%s5 + $0x10] sm:$0xf]
        %v496 = vld [vmem:[%s5 + $0x14] sm:$0xf]
        %v497 = vld [vmem:[%s5 + $0x18] sm:$0xf]
        %v498 = vld [vmem:[%s5 + $0x1c] sm:$0xf]
        %v499 = vld [vmem:[%s5 + $0x20] sm:$0xf]
        %v500 = vld [vmem:[%s5 + $0x24] sm:$0xf]
        %v501 = vld [vmem:[%s5 + $0x28] sm:$0xf]
        %v502 = vld [vmem:[%s5 + $0x2c] sm:$0xf]
        %v503 = vld [vmem:[%s5 + $0x30] sm:$0xf]
        %v504 = vld [vmem:[%s5 + $0x34] sm:$0xf]
        %v505 = vld [vmem:[%s5 + $0x38] sm:$0xf]
        %v506 = vld [vmem:[%s5 + $0x3c] sm:$0xf]
        %v507 = vld [vmem:[%s6] sm:$0x1]
        %v508 = vpack.c.bf16 %v488, %v487
        %v509 = vpack.c.bf16 %v490, %v489
        %v511 = vlaneseq
        %v512 = vshrl.u32 %v511, 7
        %v513 = vsub.s32 0, %v512
        %v514 = vrot.slane %v507, %v513
        %v532 = vunpack.c.l.b16 %v491
        %v533 = vunpack.c.l.b16 %v492
        %v534 = vunpack.c.l.b16 %v493
        %v535 = vunpack.c.l.b16 %v494
        %v536 = vunpack.c.l.b16 %v495
        %v537 = vunpack.c.l.b16 %v496
        %v538 = vunpack.c.l.b16 %v497
        %v539 = vunpack.c.l.b16 %v498
        %v540 = vunpack.c.l.b16 %v499
        %v541 = vunpack.c.l.b16 %v500
        %v542 = vunpack.c.l.b16 %v501
        %v543 = vunpack.c.l.b16 %v502
        %v544 = vunpack.c.l.b16 %v503
        %v545 = vunpack.c.l.b16 %v504
        %v546 = vunpack.c.l.b16 %v505
        %v547 = vunpack.c.l.b16 %v506
        %v548 = vpack.c.b16 %v533, %v532
        %v549 = vpack.c.b16 %v535, %v534
        %v550 = vpack.c.b16 %v537, %v536
        %v551 = vpack.c.b16 %v539, %v538
        %v552 = vpack.c.b16 %v541, %v540
        %v553 = vpack.c.b16 %v543, %v542
        %v554 = vpack.c.b16 %v545, %v544
        %v555 = vpack.c.b16 %v547, %v546
        %564 = vmatprep.subr.bf16.mxu0 0
        %565 = vmatpush1.bf16.msra.mxu0 %v555
        %566 = vmatprep.subr.bf16.mxu0 0
        %567 = vmatpush1.bf16.msra.mxu0 %v554
        %568 = vmatprep.subr.bf16.mxu0 0
        %569 = vmatpush1.bf16.msra.mxu0 %v553
        %570 = vmatprep.subr.bf16.mxu0 0
        %571 = vmatpush1.bf16.msra.mxu0 %v552
        %572 = vmatprep.subr.bf16.mxu0 0
        %573 = vmatpush1.bf16.msra.mxu0 %v551
        %574 = vmatprep.subr.bf16.mxu0 0
        %575 = vmatpush1.bf16.msra.mxu0 %v550
        %576 = vmatprep.subr.bf16.mxu0 0
        %577 = vmatpush1.bf16.msra.mxu0 %v549
        %578 = vmatprep.subr.bf16.mxu0 0
        %579 = vmatpush1.bf16.msra.mxu0 %v548
        %580 = vmatprep.subr.bf16.mxu0 0
        %581 = vmatpush2.bf16.msra.mxu0 0
        %582 = vmatprep.subr.bf16.mxu0 0
        %583 = vmatpush2.bf16.msra.mxu0 0
        %584 = vmatprep.subr.bf16.mxu0 0
        %585 = vmatpush2.bf16.msra.mxu0 0
        %586 = vmatprep.subr.bf16.mxu0 0
        %587 = vmatpush2.bf16.msra.mxu0 0
        %588 = vmatprep.subr.bf16.mxu0 0
        %589 = vmatpush2.bf16.msra.mxu0 0
        %590 = vmatprep.subr.bf16.mxu0 0
        %591 = vmatpush2.bf16.msra.mxu0 0
        %592 = vmatprep.subr.bf16.mxu0 0
        %593 = vmatpush2.bf16.msra.mxu0 0
        %594 = vmatprep.subr.bf16.mxu0 0
        %595 = vmatpush2.bf16.msra.mxu0 0
        %596 = vmatprep.mubr.bf16.mxu0 0
        %597 = vmatmul.mubr.bf16.gmra.mxu0 %v508
        %v598 = vpop.f32.mrf.mxu0
        %v599 = vadd.f32 %v514, %v598
        %v600 = vpop.f32.mrf.mxu0
        %v601 = vpop.f32.mrf.mxu0
        %v602 = vadd.f32 %v514, %v601
        %v603 = vpop.f32.mrf.mxu0
        %604 = vmatprep.mubr.bf16.mxu0 0
        %605 = vmatmul.mubr.bf16.gmra.mxu0 %v509
        %v606 = vpop.f32.mrf.mxu0
        %v607 = vadd.f32 %v514, %v606
        %v608 = vpop.f32.mrf.mxu0
        %v609 = vpop.f32.mrf.mxu0
        %v610 = vadd.f32 %v514, %v609
        %v611 = vpop.f32.mrf.mxu0
        %612 = vdwg.mxu0
        %v613 = vmax.f32 %v599, 0.0
        %v614 = vmax.f32 %v602, 0.0
        %v615 = vmax.f32 %v607, 0.0
        %v616 = vmax.f32 %v610, 0.0
        %617 = vst.msk [vmem:[%s280] sm:$0xff] %vm330, %v613
        %618 = vst.msk [vmem:[%s280 + $0x8] sm:$0xff] %vm330, %v614
        %619 = vst.msk [vmem:[%s280 + $0x10] sm:$0xff] %vm330, %v615
        %620 = vst.msk [vmem:[%s280 + $0x18] sm:$0xff] %vm330, %v616
        %s621 = sand.u32 %s178, 1
        %s622 = sand.u32 %s178, 1
        %s623 = smul.addr %s622, 32
        %s624 = scalar_lea.vmem [#allocation2], %s623
        // Predicated region
        $region49: #{tpu_custom_call.1} parent=47 // pred_check
          %p625 = pneg %p188
        $region50: #{tpu_custom_call.1} parent=47 // pred_check_branch
          %627 = sbr.rel (%p625) target = $region52
        $region51: #{tpu_custom_call.1} parent=47 // pred_region
          %s628 = smul.u32 4, %s18
          %s629 = ssub.s32 7, %s628
          %p630 = scmp.lt.s32.totalorder %s629, 4
          %s631 = scalar_select %p630, %s629, 4
          %s632 = smul.u32 128, %s631
          %p633 = scmp.ne.s32.totalorder 0, %s632
          %s634 = smul.addr %s628, 8
          %s635 = scalar_lea.vmem %s7, %s634
          // Predicated region
          $region53: #{tpu_custom_call.1} parent=51 // pred_check
            %p636 = pneg %p633
          $region54: #{tpu_custom_call.1} parent=51 // pred_check_branch
            %638 = sbr.rel (%p636) target = $region56
          $region55: #{tpu_custom_call.1} parent=51 // pred_region
            // Predicated region
            $region57: #{tpu_custom_call.1} parent=55 // pred_check
              _
            $region58: #{tpu_custom_call.1} parent=55 // pred_check_branch
              %640 = sbr.rel (0) target = $region60
            $region59: #{tpu_custom_call.1} parent=55 // pred_region
              // Predicated region
              $region79: #{tpu_custom_call.1} parent=59 // pred_check
                _
              $region80: #{tpu_custom_call.1} parent=59 // pred_check_branch
                %696 = sbr.rel (0) target = $region82
              $region81: #{tpu_custom_call.1} parent=59 // pred_region
                %s697 = sshrl.u32 %s631, 2
                // While loop
                $region83: #{tpu_custom_call.1} parent=81 // loop_pre_header
                  _
                $region84: #{tpu_custom_call.1} parent=81 // loop_header
                  %s699 = sphi 0, %s701
                  %p700 = scmp.ge.s32.totalorder %s699, %s697
                  %s704 = sphi 0, %s717
                  %s705 = sphi %s624, %s720
                  %s706 = sphi %s635, %s721
                $region85: #{tpu_custom_call.1} parent=81 // loop_header_branch
                  %703 = sbr.rel (%p700) target = $region89
                $region86: #{tpu_custom_call.1} parent=81 // loop_body
                  %v707 = vld [vmem:[%s705] sm:$0xff]
                  %708 = vst [vmem:[%s706] sm:$0xff] %v707
                  %v709 = vld [vmem:[%s705 + $0x8] sm:$0xff]
                  %710 = vst [vmem:[%s706 + $0x8] sm:$0xff] %v709
                  %v711 = vld [vmem:[%s705 + $0x10] sm:$0xff]
                  %712 = vst [vmem:[%s706 + $0x10] sm:$0xff] %v711
                  %v713 = vld [vmem:[%s705 + $0x18] sm:$0xff]
                  %714 = vst [vmem:[%s706 + $0x18] sm:$0xff] %v713
                  %s715 = sadd.s32 1, %s704
                  %p716 = scmp.ge.s32.totalorder %s715, %s697
                  %s717 = scalar_select %p716, 0, %s715
                  %s718 = smul.u32 %s717, 32
                  %s719 = smul.u32 %s717, 32
                  %s720 = scalar_lea.vmem %s624, %s718 [#allocation2]
                  %s721 = scalar_lea.vmem %s635, %s719
                $region87: #{tpu_custom_call.1} parent=81 // loop_footer
                  %s701 = sadd.s32 %s699, 1
                $region88: #{tpu_custom_call.1} parent=81 // loop_footer_branch
                  %698 = sbr.rel target = $region84
                $region89: #{tpu_custom_call.1} parent=81 // loop_exit
                  _
                %s722 = sshrl.u32 %s631, 2
                %s723 = sand.u32 %s631, 3
                %s724 = smul.u32 %s722, 4
                %s725 = smul.u32 8, %s724
                %s726 = scalar_lea.vmem %s624, %s725 [#allocation2]
                %s727 = smul.u32 8, %s724
                %s728 = scalar_lea.vmem %s635, %s727
                // While loop
                $region90: #{tpu_custom_call.1} parent=81 // loop_pre_header
                  _
                $region91: #{tpu_custom_call.1} parent=81 // loop_header
                  %s730 = sphi 0, %s732
                  %p731 = scmp.ge.s32.totalorder %s730, %s723
                  %s735 = sphi 0, %s742
                  %s736 = sphi %s726, %s745
                  %s737 = sphi %s728, %s746
                $region92: #{tpu_custom_call.1} parent=81 // loop_header_branch
                  %734 = sbr.rel (%p731) target = $region96
                $region93: #{tpu_custom_call.1} parent=81 // loop_body
                  %v738 = vld [vmem:[%s736] sm:$0xff]
                  %739 = vst [vmem:[%s737] sm:$0xff] %v738
                  %s740 = sadd.s32 1, %s735
                  %p741 = scmp.ge.s32.totalorder %s740, %s723
                  %s742 = scalar_select %p741, 0, %s740
                  %s743 = smul.u32 %s742, 8
                  %s744 = smul.u32 %s742, 8
                  %s745 = scalar_lea.vmem %s726, %s743 [#allocation2]
                  %s746 = scalar_lea.vmem %s728, %s744
                $region94: #{tpu_custom_call.1} parent=81 // loop_footer
                  %s732 = sadd.s32 %s730, 1
                $region95: #{tpu_custom_call.1} parent=81 // loop_footer_branch
                  %729 = sbr.rel target = $region91
                $region96: #{tpu_custom_call.1} parent=81 // loop_exit
                  _
              $region82: #{tpu_custom_call.1} parent=59 // pred_fallthru
                _
              // Predicated region
              $region97: #{tpu_custom_call.1} parent=59 // pred_check
                _
              $region98: #{tpu_custom_call.1} parent=59 // pred_check_branch
                %748 = sbr.rel target = $region100
              $region99: #{tpu_custom_call.1} parent=59 // pred_region
                _
              $region100: #{tpu_custom_call.1} parent=59 // pred_fallthru
                _
            $region60: #{tpu_custom_call.1} parent=55 // pred_fallthru
              _
            // Predicated region
            $region61: #{tpu_custom_call.1} parent=55 // pred_check
              _
            $region62: #{tpu_custom_call.1} parent=55 // pred_check_branch
              %642 = sbr.rel target = $region64
            $region63: #{tpu_custom_call.1} parent=55 // pred_region
              %s644 = ssub.s32 256, 1
              %s645 = sshrl.u32 %s631, 2
              // While loop
              $region65: #{tpu_custom_call.1} parent=63 // loop_pre_header
                _
              $region66: #{tpu_custom_call.1} parent=63 // loop_header
                %s647 = sphi 0, %s649
                %p648 = scmp.ge.s32.totalorder %s647, %s645
                %s652 = sphi 0, %s665
                %s653 = sphi %s624, %s668
                %s654 = sphi %s635, %s669
              $region67: #{tpu_custom_call.1} parent=63 // loop_header_branch
                %651 = sbr.rel (%p648) target = $region71
              $region68: #{tpu_custom_call.1} parent=63 // loop_body
                %v655 = vld [vmem:[%s653] sm:%s644]
                %656 = vst [vmem:[%s654] sm:%s644] %v655
                %v657 = vld [vmem:[%s653 + $0x8] sm:%s644]
                %658 = vst [vmem:[%s654 + $0x8] sm:%s644] %v657
                %v659 = vld [vmem:[%s653 + $0x10] sm:%s644]
                %660 = vst [vmem:[%s654 + $0x10] sm:%s644] %v659
                %v661 = vld [vmem:[%s653 + $0x18] sm:%s644]
                %662 = vst [vmem:[%s654 + $0x18] sm:%s644] %v661
                %s663 = sadd.s32 1, %s652
                %p664 = scmp.ge.s32.totalorder %s663, %s645
                %s665 = scalar_select %p664, 0, %s663
                %s666 = smul.u32 %s665, 32
                %s667 = smul.u32 %s665, 32
                %s668 = scalar_lea.vmem %s624, %s666 [#allocation2]
                %s669 = scalar_lea.vmem %s635, %s667
              $region69: #{tpu_custom_call.1} parent=63 // loop_footer
                %s649 = sadd.s32 %s647, 1
              $region70: #{tpu_custom_call.1} parent=63 // loop_footer_branch
                %646 = sbr.rel target = $region66
              $region71: #{tpu_custom_call.1} parent=63 // loop_exit
                _
              %s670 = sshrl.u32 %s631, 2
              %s671 = sand.u32 %s631, 3
              %s672 = smul.u32 %s670, 4
              %s673 = smul.u32 8, %s672
              %s674 = scalar_lea.vmem %s624, %s673 [#allocation2]
              %s675 = smul.u32 8, %s672
              %s676 = scalar_lea.vmem %s635, %s675
              // While loop
              $region72: #{tpu_custom_call.1} parent=63 // loop_pre_header
                _
              $region73: #{tpu_custom_call.1} parent=63 // loop_header
                %s678 = sphi 0, %s680
                %p679 = scmp.ge.s32.totalorder %s678, %s671
                %s683 = sphi 0, %s690
                %s684 = sphi %s674, %s693
                %s685 = sphi %s676, %s694
              $region74: #{tpu_custom_call.1} parent=63 // loop_header_branch
                %682 = sbr.rel (%p679) target = $region78
              $region75: #{tpu_custom_call.1} parent=63 // loop_body
                %v686 = vld [vmem:[%s684] sm:%s644]
                %687 = vst [vmem:[%s685] sm:%s644] %v686
                %s688 = sadd.s32 1, %s683
                %p689 = scmp.ge.s32.totalorder %s688, %s671
                %s690 = scalar_select %p689, 0, %s688
                %s691 = smul.u32 %s690, 8
                %s692 = smul.u32 %s690, 8
                %s693 = scalar_lea.vmem %s674, %s691 [#allocation2]
                %s694 = scalar_lea.vmem %s676, %s692
              $region76: #{tpu_custom_call.1} parent=63 // loop_footer
                %s680 = sadd.s32 %s678, 1
              $region77: #{tpu_custom_call.1} parent=63 // loop_footer_branch
                %677 = sbr.rel target = $region73
              $region78: #{tpu_custom_call.1} parent=63 // loop_exit
                _
            $region64: #{tpu_custom_call.1} parent=55 // pred_fallthru
              _
          $region56: #{tpu_custom_call.1} parent=51 // pred_fallthru
            _
          %749 = vnop
        $region52: #{tpu_custom_call.1} parent=47 // pred_fallthru
          _
      $region48: #{tpu_custom_call.1} parent=5 // pred_fallthru
        _
      %p750 = scmp.le.s32.totalorder 2, %s13
      // Predicated region
      $region101: #{tpu_custom_call.1} parent=5 // pred_check
        %p751 = pneg %p750
      $region102: #{tpu_custom_call.1} parent=5 // pred_check_branch
        %753 = sbr.rel (%p751) target = $region104
      $region103: #{tpu_custom_call.1} parent=5 // pred_region
        %s754 = ssub.s32 %s13, 2
        // Predicated region
        $region105: #{tpu_custom_call.1} parent=103 // pred_check
          %p755 = pneg %p194
        $region106: #{tpu_custom_call.1} parent=103 // pred_check_branch
          %757 = sbr.rel (%p755) target = $region108
        $region107: #{tpu_custom_call.1} parent=103 // pred_region
          %s758 = sand.u32 %s179, 1
          %s759 = sand.u32 %s179, 1
          %s760 = smul.addr %s759, 32
          %s761 = scalar_lea.vmem [#allocation2], %s760
        $region108: #{tpu_custom_call.1} parent=103 // pred_fallthru
          _
      $region104: #{tpu_custom_call.1} parent=5 // pred_fallthru
        _
    $region6: #{tpu_custom_call.1} parent=1 // loop_footer
      %s17 = sadd.s32 1, %s13
    $region7: #{tpu_custom_call.1} parent=1 // loop_footer_branch
      %12 = sbr.rel target = $region3
    $region8: #{tpu_custom_call.1} parent=1 // loop_exit
      _

</llo_original>
